<compile_context>
chip_gen: v7x
topology: tpu7x:2x2x1
jax: 0.10.0
libtpu: 0.0.40
codegen_flags: <defaults>
</compile_context>

<pallas_src>
import jax
import jax.numpy as jnp
from jax.experimental import pallas as pl
from jax.experimental.pallas import tpu as pltpu


def _classifier_kernel(x_ref, x2_ref, t_ref, w1_ref, w2_ref, o_ref):
    B, C, _ = x_ref.shape
    hidden = w1_ref.shape[1]

    # ---- lane-dense spatial pooling: single lane reduce over the (H*W) last dim ----
    # (1/(H*W) mean factor is pre-folded into w1_ref rows 0..2C-1 by prepare_params.)
    xs = jnp.sum(x_ref[...], axis=-1)     # (B, C)
    x2s = jnp.sum(x2_ref[...], axis=-1)   # (B, C)

    # ---- first Linear: two tiny MXU matmuls (K=C each); avoids the sub-128-lane
    # concat of the pooled blocks and any XLU relayout on the serial path.
    h = (jnp.dot(xs, w1_ref[0:C, :], preferred_element_type=jnp.float32)
         + jnp.dot(x2s, w1_ref[C:2 * C, :], preferred_element_type=jnp.float32))

    # ---- 't' column (K=1) stays off the MXU: per-row scalar reads from SMEM,
    # assembled into a (B, 1) column via iota/select (B is tiny & static), then a
    # VPU broadcast multiply against the packed w1_t row; b1 is the last packed row.
    row = jax.lax.broadcasted_iota(jnp.int32, (B, 1), 0)
    t_col = jnp.zeros((B, 1), jnp.float32)
    for b in range(B):                     # static unroll; B=2
        t_col = jnp.where(row == b, t_ref[b], t_col)
    h = h + t_col * w1_ref[2 * C:2 * C + 1, :] + w1_ref[2 * C + 1:2 * C + 2, :]
    h = jnp.maximum(h, 0.0)

    # ---- second Linear: bias packed as the last row of w2_ref ----
    logits = (jnp.dot(h, w2_ref[:hidden, :], preferred_element_type=jnp.float32)
              + w2_ref[hidden:, :])

    # ---- numerically-stable softmax; exact divide (denominator is (B,1),
    # neither VPU nor EUP is remotely saturated, so approx would buy nothing).
    m = jnp.max(logits, axis=-1, keepdims=True)
    e = jnp.exp(logits - m)
    s = jnp.sum(e, axis=-1, keepdims=True)
    o_ref[...] = e / s


def prepare_params(params, x_input_dim, spatial_hw):
    """One-time packing of nn.Linear params into the two kernel weight operands."""
    C = x_input_dim
    inv_hw = jnp.float32(1.0 / spatial_hw)
    w1, b1, w2, b2 = params["w1"], params["b1"], params["w2"], params["b2"]
    w1pack = jnp.concatenate(
        [w1[:2 * C, :] * inv_hw,          # pooled-feature rows (mean folded in)
         w1[2 * C:2 * C + 1, :],          # 't' row
         b1[None, :]],                    # bias row
        axis=0).astype(jnp.float32)       # (2C + 2, hidden)
    w2pack = jnp.concatenate([w2, b2[None, :]],
                             axis=0).astype(jnp.float32)  # (hidden + 1, output)
    return {"w1pack": w1pack, "w2pack": w2pack}


@jax.jit
def simple_classifier_2_forward(x, x2, t, packed):
    """x, x2: (B, C, H, W) f32; t: (B,) f32; packed: from prepare_params.
    Returns softmax probs (B, output_dim)."""
    B, C, H, W = x.shape
    w1pack, w2pack = packed["w1pack"], packed["w2pack"]
    output_dim = w2pack.shape[1]

    # Free views of contiguous row-major NCHW tensors (a transposed/sharded view
    # would force XLA to materialize a copy here — still correct, just an extra op).
    x3 = x.reshape(B, C, H * W).astype(jnp.float32)
    x23 = x2.reshape(B, C, H * W).astype(jnp.float32)
    t1 = t.astype(jnp.float32)            # (B,) -> SMEM scalars

    vmem = pl.BlockSpec(memory_space=pltpu.MemorySpace.VMEM)
    smem = pl.BlockSpec(memory_space=pltpu.MemorySpace.SMEM)

    return pl.pallas_call(
        _classifier_kernel,
        out_shape=jax.ShapeDtypeStruct((B, output_dim), jnp.float32),
        in_specs=[vmem, vmem, smem, vmem, vmem],
        out_specs=vmem,
    )(x3, x23, t1, w1pack, w2pack)


def init_params(key, x_input_dim, hidden_dim, output_dim):
    """Deterministic init matching nn.Linear shapes (uniform +-1/sqrt(fan_in))."""
    in_dim = 2 * x_input_dim + 1
    k1, k2, k3, k4 = jax.random.split(key, 4)
    lim1 = 1.0 / jnp.sqrt(in_dim)
    lim2 = 1.0 / jnp.sqrt(hidden_dim)
    return {
        "w1": jax.random.uniform(k1, (in_dim, hidden_dim), jnp.float32, -lim1, lim1),
        "b1": jax.random.uniform(k2, (hidden_dim,), jnp.float32, -lim1, lim1),
        "w2": jax.random.uniform(k3, (hidden_dim, output_dim), jnp.float32, -lim2, lim2),
        "b2": jax.random.uniform(k4, (output_dim,), jnp.float32, -lim2, lim2),
    }


def _reference_forward(x, x2, t, params):
    xm = jnp.mean(x, axis=(-1, -2))
    x2m = jnp.mean(x2, axis=(-1, -2))
    xt = jnp.concatenate([xm, x2m, t[:, None]], axis=-1)
    h = jnp.maximum(xt @ params["w1"] + params["b1"], 0.0)
    logits = h @ params["w2"] + params["b2"]
    return jax.nn.softmax(logits, axis=-1)


if __name__ == "__main__":
    # Small shapes: batch=2, channels (x_input_dim)=4, spatial=16x16, hidden=32, output=8.
    B, C, H, W = 2, 4, 16, 16
    hidden_dim, output_dim = 32, 8

    key = jax.random.PRNGKey(0)
    kx, kx2, kt, kp = jax.random.split(key, 4)
    x = jax.random.normal(kx, (B, C, H, W), jnp.float32)
    x2 = jax.random.normal(kx2, (B, C, H, W), jnp.float32)
    t = jax.random.uniform(kt, (B,), jnp.float32)

    params = init_params(kp, x_input_dim=C, hidden_dim=hidden_dim, output_dim=output_dim)
    packed = prepare_params(params, x_input_dim=C, spatial_hw=H * W)  # one-time packing

    out = jax.block_until_ready(simple_classifier_2_forward(x, x2, t, packed))
    ref = _reference_forward(x, x2, t, params)

    assert out.shape == (B, output_dim)
    assert jnp.allclose(out, ref, atol=1e-5, rtol=1e-5), "mismatch vs pure-JAX reference"
    assert jnp.allclose(jnp.sum(out, axis=-1), 1.0, atol=1e-5), "softmax rows do not sum to 1"

    print("KERNEL_OK")
</pallas_src>

<mosaic_0001>
module attributes {stable_mosaic.version = 11 : i64} {
  func.func @_classifier_kernel(%arg0: memref<2x4x256xf32, #tpu.memory_space<vmem>>, %arg1: memref<2x4x256xf32, #tpu.memory_space<vmem>>, %arg2: memref<2xf32, #tpu.memory_space<smem>>, %arg3: memref<10x32xf32, #tpu.memory_space<vmem>>, %arg4: memref<33x8xf32, #tpu.memory_space<vmem>>, %arg5: memref<2x8xf32, #tpu.memory_space<vmem>>) attributes {dimension_semantics = [], scalar_prefetch = 0 : i64, scratch_operands = 0 : i64, tpu.core_type = #tpu.core_type<tc>} {
    %c0 = arith.constant 0 : index
    %c0_0 = arith.constant 0 : index
    %c0_1 = arith.constant 0 : index
    %0 = vector.load %arg0[%c0, %c0_0, %c0_1] : memref<2x4x256xf32, #tpu.memory_space<vmem>>, vector<2x4x256xf32>
    %cst = arith.constant dense<0.000000e+00> : vector<2x4xf32>
    %1 = vector.multi_reduction <add>, %0, %cst [2] : vector<2x4x256xf32> to vector<2x4xf32>
    %c0_2 = arith.constant 0 : index
    %c0_3 = arith.constant 0 : index
    %c0_4 = arith.constant 0 : index
    %2 = vector.load %arg1[%c0_2, %c0_3, %c0_4] : memref<2x4x256xf32, #tpu.memory_space<vmem>>, vector<2x4x256xf32>
    %cst_5 = arith.constant dense<0.000000e+00> : vector<2x4xf32>
    %3 = vector.multi_reduction <add>, %2, %cst_5 [2] : vector<2x4x256xf32> to vector<2x4xf32>
    %c0_6 = arith.constant 0 : index
    %c0_7 = arith.constant 0 : index
    %4 = vector.load %arg3[%c0_6, %c0_7] : memref<10x32xf32, #tpu.memory_space<vmem>>, vector<4x32xf32>
    %cst_8 = arith.constant dense<0.000000e+00> : vector<2x32xf32>
    %5 = tpu.matmul %1, %4, %cst_8 {dimension_numbers = #tpu.dot_dimension_numbers<[1], [0], [0], [1], [0, 0, 1, 1], [], []>} : vector<2x4xf32>, vector<4x32xf32>, vector<2x32xf32> -> vector<2x32xf32>
    %c4 = arith.constant 4 : index
    %c0_9 = arith.constant 0 : index
    %6 = vector.load %arg3[%c4, %c0_9] : memref<10x32xf32, #tpu.memory_space<vmem>>, vector<4x32xf32>
    %cst_10 = arith.constant dense<0.000000e+00> : vector<2x32xf32>
    %7 = tpu.matmul %3, %6, %cst_10 {dimension_numbers = #tpu.dot_dimension_numbers<[1], [0], [0], [1], [0, 0, 1, 1], [], []>} : vector<2x4xf32>, vector<4x32xf32>, vector<2x32xf32> -> vector<2x32xf32>
    %8 = arith.addf %5, %7 : vector<2x32xf32>
    %9 = tpu.iota {dimensions = array<i32: 0>} : vector<2x1xi32>
    %cst_11 = arith.constant 0.000000e+00 : f32
    %10 = vector.broadcast %cst_11 : f32 to vector<2x1xf32>
    %c0_i32 = arith.constant 0 : i32
    %11 = vector.broadcast %c0_i32 : i32 to vector<2x1xi32>
    %12 = arith.cmpi eq, %9, %11 : vector<2x1xi32>
    %c0_12 = arith.constant 0 : index
    %13 = memref.load %arg2[%c0_12] : memref<2xf32, #tpu.memory_space<smem>>
    %14 = vector.broadcast %13 : f32 to vector<2x1xf32>
    %15 = arith.select %12, %14, %10 : vector<2x1xi1>, vector<2x1xf32>
    %c1_i32 = arith.constant 1 : i32
    %16 = vector.broadcast %c1_i32 : i32 to vector<2x1xi32>
    %17 = arith.cmpi eq, %9, %16 : vector<2x1xi32>
    %c1 = arith.constant 1 : index
    %18 = memref.load %arg2[%c1] : memref<2xf32, #tpu.memory_space<smem>>
    %19 = vector.broadcast %18 : f32 to vector<2x1xf32>
    %20 = arith.select %17, %19, %15 : vector<2x1xi1>, vector<2x1xf32>
    %c8 = arith.constant 8 : index
    %c0_13 = arith.constant 0 : index
    %21 = vector.load %arg3[%c8, %c0_13] : memref<10x32xf32, #tpu.memory_space<vmem>>, vector<1x32xf32>
    %22 = vector.broadcast %20 : vector<2x1xf32> to vector<2x32xf32>
    %23 = vector.broadcast %21 : vector<1x32xf32> to vector<2x32xf32>
    %24 = arith.mulf %22, %23 : vector<2x32xf32>
    %25 = arith.addf %8, %24 : vector<2x32xf32>
    %c9 = arith.constant 9 : index
    %c0_14 = arith.constant 0 : index
    %26 = vector.load %arg3[%c9, %c0_14] : memref<10x32xf32, #tpu.memory_space<vmem>>, vector<1x32xf32>
    %27 = vector.broadcast %26 : vector<1x32xf32> to vector<2x32xf32>
    %28 = arith.addf %25, %27 : vector<2x32xf32>
    %cst_15 = arith.constant 0.000000e+00 : f32
    %29 = vector.broadcast %cst_15 : f32 to vector<2x32xf32>
    %30 = arith.maximumf %28, %29 : vector<2x32xf32>
    %c0_16 = arith.constant 0 : index
    %c0_17 = arith.constant 0 : index
    %31 = vector.load %arg4[%c0_16, %c0_17] : memref<33x8xf32, #tpu.memory_space<vmem>>, vector<32x8xf32>
    %cst_18 = arith.constant dense<0.000000e+00> : vector<2x8xf32>
    %32 = tpu.matmul %30, %31, %cst_18 {dimension_numbers = #tpu.dot_dimension_numbers<[1], [0], [0], [1], [0, 0, 1, 1], [], []>} : vector<2x32xf32>, vector<32x8xf32>, vector<2x8xf32> -> vector<2x8xf32>
    %c32 = arith.constant 32 : index
    %c0_19 = arith.constant 0 : index
    %33 = vector.load %arg4[%c32, %c0_19] : memref<33x8xf32, #tpu.memory_space<vmem>>, vector<1x8xf32>
    %34 = vector.broadcast %33 : vector<1x8xf32> to vector<2x8xf32>
    %35 = arith.addf %32, %34 : vector<2x8xf32>
    %cst_20 = arith.constant dense<0xFF800000> : vector<2xf32>
    %36 = vector.multi_reduction <maximumf>, %35, %cst_20 [1] : vector<2x8xf32> to vector<2xf32>
    %37 = vector.shape_cast %36 : vector<2xf32> to vector<2x1xf32>
    %38 = vector.broadcast %37 : vector<2x1xf32> to vector<2x8xf32>
    %39 = arith.subf %35, %38 : vector<2x8xf32>
    %40 = math.exp %39 : vector<2x8xf32>
    %cst_21 = arith.constant dense<0.000000e+00> : vector<2xf32>
    %41 = vector.multi_reduction <add>, %40, %cst_21 [1] : vector<2x8xf32> to vector<2xf32>
    %42 = vector.shape_cast %41 : vector<2xf32> to vector<2x1xf32>
    %43 = vector.broadcast %42 : vector<2x1xf32> to vector<2x8xf32>
    %44 = arith.divf %40, %43 : vector<2x8xf32>
    %c0_22 = arith.constant 0 : index
    %c0_23 = arith.constant 0 : index
    %45 = vector.load %arg5[%c0_22, %c0_23] : memref<2x8xf32, #tpu.memory_space<vmem>>, vector<2x8xf32>
    tpu.vector_store %arg5[%c0_22, %c0_23], %44 {strides = array<i32>} : memref<2x8xf32, #tpu.memory_space<vmem>>, vector<2x8xf32>,
    return
  }
}

</mosaic_0001>

<llo_original>
// kernel: simple_classifier_2_forward.1
$region0: #{simple_classifier_2_forward.1}
  #allocation0 [shape = 'u32[]', space=smem, size = 0x4, offset = 0x4, fixed_abs, tag = 'smem constant byte address 0x4 - core index']
  #allocation1 [shape = 'u32[144,128]{1,0:T(1,128)}', space=vmem, size = 0x12000, scoped, tag = 'internal scratch']
  %s0 = inlined_call_operand.vmem [shape: f32[2,4,256], index: 0, kind: input, shape index: {}]
  %s1 = inlined_call_operand.vmem [shape: f32[2,4,256], index: 1, kind: input, shape index: {}]
  %s2 = inlined_call_operand.vmem [shape: f32[2], index: 2, kind: input, shape index: {}]
  %s3 = inlined_call_operand.vmem [shape: f32[10,32], index: 3, kind: input, shape index: {}]
  %s4 = inlined_call_operand.vmem [shape: f32[33,8], index: 4, kind: input, shape index: {}]
  %s5 = inlined_call_operand.hbm [shape: f32[2,8], index: 5, kind: output, shape index: {}]
  %s6 = sld [smem:[#allocation0]]
  $region34: #{simple_classifier_2_forward.1} parent=0
    _
  %s8 = ssub.s32 1, %s6
  %s9 = scalar_select 0, %s8, %s6
  $region1: #{simple_classifier_2_forward.1} parent=0
    #allocation2 [shape = 'u8[512]{0}', space=smem, size = 0x200, scoped, tag = 'input window, operand 2, single buffered']
    #allocation3 [shape = 's32[1]{0}', space=sflag, size = 0x4, scoped, tag = 'scoped memory for simple_classifier_2_forward.1']
    #allocation4 [shape = 's32[1]{0}', space=sflag, size = 0x4, scoped, tag = 'scoped memory for simple_classifier_2_forward.1']
    #allocation5 [shape = 'u8[1024]{0}', space=vmem, size = 0x400, scoped, tag = 'output window, operand 0, single buffered']
    %10 = vsyncpa [#allocation4], 0
    %11 = vsyncpa [#allocation3], 0
    // Predicated region
    $region2: #{simple_classifier_2_forward.1} parent=1 // pred_check
      _
    $region3: #{simple_classifier_2_forward.1} parent=1 // pred_check_branch
      %13 = sbr.rel (0) target = $region5
    $region4: #{simple_classifier_2_forward.1} parent=1 // pred_region
      _
    $region5: #{simple_classifier_2_forward.1} parent=1 // pred_fallthru
      _
    // Predicated region
    $region6: #{simple_classifier_2_forward.1} parent=1 // pred_check
      _
    $region7: #{simple_classifier_2_forward.1} parent=1 // pred_check_branch
      %15 = sbr.rel (0) target = $region9
    $region8: #{simple_classifier_2_forward.1} parent=1 // pred_region
      _
    $region9: #{simple_classifier_2_forward.1} parent=1 // pred_fallthru
      _
    // Predicated region
    $region10: #{simple_classifier_2_forward.1} parent=1 // pred_check
      _
    $region11: #{simple_classifier_2_forward.1} parent=1 // pred_check_branch
      %17 = sbr.rel (0) target = $region13
    $region12: #{simple_classifier_2_forward.1} parent=1 // pred_region
      %s19 = ssub.s32 16, 16
      %20 = vsyncadd [#allocation4], %s19
      %s22 = sshll.u32 %s2, 4
      %s23 = int_to_ptr.vmem [resolvable:$true] %s22
      %25 = dma.vmem_to_smem %s23, 16, [#allocation2], [#allocation4]
    $region13: #{simple_classifier_2_forward.1} parent=1 // pred_fallthru
      _
    // Predicated region
    $region14: #{simple_classifier_2_forward.1} parent=1 // pred_check
      _
    $region15: #{simple_classifier_2_forward.1} parent=1 // pred_check_branch
      %27 = sbr.rel (0) target = $region17
    $region16: #{simple_classifier_2_forward.1} parent=1 // pred_region
      _
    $region17: #{simple_classifier_2_forward.1} parent=1 // pred_fallthru
      _
    // Predicated region
    $region18: #{simple_classifier_2_forward.1} parent=1 // pred_check
      _
    $region19: #{simple_classifier_2_forward.1} parent=1 // pred_check_branch
      %29 = sbr.rel (0) target = $region21
    $region20: #{simple_classifier_2_forward.1} parent=1 // pred_region
      _
    $region21: #{simple_classifier_2_forward.1} parent=1 // pred_fallthru
      _
    // Predicated region
    $region22: #{simple_classifier_2_forward.1} parent=1 // pred_check
      _
    $region23: #{simple_classifier_2_forward.1} parent=1 // pred_check_branch
      %31 = sbr.rel (0) target = $region25
    $region24: #{simple_classifier_2_forward.1} parent=1 // pred_region
      %32 = dma.done [#allocation4], 16
    $region25: #{simple_classifier_2_forward.1} parent=1 // pred_fallthru
      _
    %33 = sfence
    %v34 = vld [vmem:[%s0] sm:$0xff]
    %v35 = vld [vmem:[%s0 + $0x8] sm:$0xff]
    %v38 = vcombine.high %v34, %v34
    %v39 = vcombine.high %v35, %v35
    %vm42 = vcmask 1043456
    %v43 = vsel %vm42, %v34, 0.0
    %v44 = vsel %vm42, %v38, 0.0
    %v45 = vadd.f32 %v43, %v44
    %46 = vadd.xlane.f32.xlu0 %v45
    %v47 = vpop.xlane.xlu0 %46
    %v48 = vsel %vm42, %v35, 0.0
    %v49 = vsel %vm42, %v39, 0.0
    %v50 = vadd.f32 %v48, %v49
    %51 = vadd.xlane.f32.xlu0 %v50
    %v52 = vpop.xlane.xlu0 %51
    %v53 = vld [vmem:[%s1] sm:$0xff]
    %v54 = vld [vmem:[%s1 + $0x8] sm:$0xff]
    %v57 = vcombine.high %v53, %v53
    %v58 = vcombine.high %v54, %v54
    %v61 = vsel %vm42, %v53, 0.0
    %v62 = vsel %vm42, %v57, 0.0
    %v63 = vadd.f32 %v61, %v62
    %64 = vadd.xlane.f32.xlu0 %v63
    %v65 = vpop.xlane.xlu0 %64
    %v66 = vsel %vm42, %v54, 0.0
    %v67 = vsel %vm42, %v58, 0.0
    %v68 = vadd.f32 %v66, %v67
    %69 = vadd.xlane.f32.xlu0 %v68
    %v70 = vpop.xlane.xlu0 %69
    %v71 = vld [vmem:[%s3] sm:$0xf]
    %v72 = vld [vmem:[%s3 + $0x4] sm:$0xf]
    %v75 = vlaneseq
    %v76 = vand.u32 %v75, 127
    %v77 = vlaneseq
    %v78 = vshrl.u32 %v77, 7
    %v79 = vsub.s32 %v76, %v78
    %v80 = vrot.slane %v65, %v79
    %v81 = vlaneseq
    %v82 = vshrl.u32 %v81, 7
    %v83 = vsub.s32 %v76, %v82
    %v84 = vrot.slane %v70, %v83
    %vm85 = vcmask 1041409
    %v86 = vsel %vm85, %v84, %v80
    %vm87 = vcmask 31744
    %v88 = vsel %vm87, %v86, 0
    %v91 = vsel %vm42, %v72, 0
    %93 = vmatprep.subr.mxu0 0.0
    %94 = vmatpush1.msra.mxu0 %v91
    %95 = vmatprep.subr.mxu0 0.0
    %96 = vmatpush1.msra.mxu0 0.0
    %97 = vmatprep.subr.mxu0 0.0
    %98 = vmatpush1.msra.mxu0 0.0
    %99 = vmatprep.subr.mxu0 0.0
    %100 = vmatpush1.msra.mxu0 0.0
    %101 = vmatprep.subr.mxu0 0.0
    %102 = vmatpush1.msra.mxu0 0.0
    %103 = vmatprep.subr.mxu0 0.0
    %104 = vmatpush1.msra.mxu0 0.0
    %105 = vmatprep.subr.mxu0 0.0
    %106 = vmatpush1.msra.mxu0 0.0
    %107 = vmatprep.subr.mxu0 0.0
    %108 = vmatpush1.msra.mxu0 0.0
    %109 = vmatprep.subr.mxu0 0.0
    %110 = vmatpush1.msra.mxu0 0.0
    %111 = vmatprep.subr.mxu0 0.0
    %112 = vmatpush1.msra.mxu0 0.0
    %113 = vmatprep.subr.mxu0 0.0
    %114 = vmatpush1.msra.mxu0 0.0
    %115 = vmatprep.subr.mxu0 0.0
    %116 = vmatpush1.msra.mxu0 0.0
    %117 = vmatprep.subr.mxu0 0.0
    %118 = vmatpush1.msra.mxu0 0.0
    %119 = vmatprep.subr.mxu0 0.0
    %120 = vmatpush1.msra.mxu0 0.0
    %121 = vmatprep.subr.mxu0 0.0
    %122 = vmatpush1.msra.mxu0 0.0
    %123 = vmatprep.subr.mxu0 0.0
    %124 = vmatpush1.msra.mxu0 0.0
    %125 = vmatprep.subr.mxu0 0.0
    %126 = vmatpush1.msra.mxu0 0.0
    %127 = vmatprep.subr.mxu0 0.0
    %128 = vmatpush1.msra.mxu0 0.0
    %129 = vmatprep.subr.mxu0 0.0
    %130 = vmatpush1.msra.mxu0 0.0
    %131 = vmatprep.subr.mxu0 0.0
    %132 = vmatpush1.msra.mxu0 0.0
    %133 = vmatprep.subr.mxu0 0.0
    %134 = vmatpush1.msra.mxu0 0.0
    %135 = vmatprep.subr.mxu0 0.0
    %136 = vmatpush1.msra.mxu0 0.0
    %137 = vmatprep.subr.mxu0 0.0
    %138 = vmatpush1.msra.mxu0 0.0
    %139 = vmatprep.subr.mxu0 0.0
    %140 = vmatpush1.msra.mxu0 0.0
    %141 = vmatprep.subr.mxu0 0.0
    %142 = vmatpush1.msra.mxu0 0.0
    %143 = vmatprep.subr.mxu0 0.0
    %144 = vmatpush1.msra.mxu0 0.0
    %145 = vmatprep.subr.mxu0 0.0
    %146 = vmatpush1.msra.mxu0 0.0
    %147 = vmatprep.subr.mxu0 0.0
    %148 = vmatpush1.msra.mxu0 0.0
    %149 = vmatprep.subr.mxu0 0.0
    %150 = vmatpush1.msra.mxu0 0.0
    %151 = vmatprep.subr.mxu0 0.0
    %152 = vmatpush1.msra.mxu0 0.0
    %153 = vmatprep.subr.mxu0 0.0
    %154 = vmatpush1.msra.mxu0 0.0
    %155 = vmatprep.subr.mxu0 0.0
    %156 = vmatpush1.msra.mxu0 0.0
    %157 = vmatprep.mubr.f32.mxu0 0.0
    %158 = vmatmul.mubr.f32.gmra.mrb[0].mxu0 %v88
    %v159 = vpop.f32.mrb[0].mxu0
    %v160 = vadd.f32 0.0, %v159
    %v161 = vpop.f32.mrb[0].mxu0
    %162 = vdwg.mxu0
    %v165 = vlaneseq
    %v166 = vshrl.u32 %v165, 7
    %v167 = vsub.s32 %v76, %v166
    %v168 = vrot.slane %v47, %v167
    %v169 = vlaneseq
    %v170 = vshrl.u32 %v169, 7
    %v171 = vsub.s32 %v76, %v170
    %v172 = vrot.slane %v52, %v171
    %v173 = vsel %vm85, %v172, %v168
    %v174 = vsel %vm87, %v173, 0
    %v177 = vsel %vm42, %v71, 0
    %179 = vmatprep.subr.mxu0 0.0
    %180 = vmatpush1.msra.mxu0 %v177
    %181 = vmatprep.subr.mxu0 0.0
    %182 = vmatpush1.msra.mxu0 0.0
    %183 = vmatprep.subr.mxu0 0.0
    %184 = vmatpush1.msra.mxu0 0.0
    %185 = vmatprep.subr.mxu0 0.0
    %186 = vmatpush1.msra.mxu0 0.0
    %187 = vmatprep.subr.mxu0 0.0
    %188 = vmatpush1.msra.mxu0 0.0
    %189 = vmatprep.subr.mxu0 0.0
    %190 = vmatpush1.msra.mxu0 0.0
    %191 = vmatprep.subr.mxu0 0.0
    %192 = vmatpush1.msra.mxu0 0.0
    %193 = vmatprep.subr.mxu0 0.0
    %194 = vmatpush1.msra.mxu0 0.0
    %195 = vmatprep.subr.mxu0 0.0
    %196 = vmatpush1.msra.mxu0 0.0
    %197 = vmatprep.subr.mxu0 0.0
    %198 = vmatpush1.msra.mxu0 0.0
    %199 = vmatprep.subr.mxu0 0.0
    %200 = vmatpush1.msra.mxu0 0.0
    %201 = vmatprep.subr.mxu0 0.0
    %202 = vmatpush1.msra.mxu0 0.0
    %203 = vmatprep.subr.mxu0 0.0
    %204 = vmatpush1.msra.mxu0 0.0
    %205 = vmatprep.subr.mxu0 0.0
    %206 = vmatpush1.msra.mxu0 0.0
    %207 = vmatprep.subr.mxu0 0.0
    %208 = vmatpush1.msra.mxu0 0.0
    %209 = vmatprep.subr.mxu0 0.0
    %210 = vmatpush1.msra.mxu0 0.0
    %211 = vmatprep.subr.mxu0 0.0
    %212 = vmatpush1.msra.mxu0 0.0
    %213 = vmatprep.subr.mxu0 0.0
    %214 = vmatpush1.msra.mxu0 0.0
    %215 = vmatprep.subr.mxu0 0.0
    %216 = vmatpush1.msra.mxu0 0.0
    %217 = vmatprep.subr.mxu0 0.0
    %218 = vmatpush1.msra.mxu0 0.0
    %219 = vmatprep.subr.mxu0 0.0
    %220 = vmatpush1.msra.mxu0 0.0
    %221 = vmatprep.subr.mxu0 0.0
    %222 = vmatpush1.msra.mxu0 0.0
    %223 = vmatprep.subr.mxu0 0.0
    %224 = vmatpush1.msra.mxu0 0.0
    %225 = vmatprep.subr.mxu0 0.0
    %226 = vmatpush1.msra.mxu0 0.0
    %227 = vmatprep.subr.mxu0 0.0
    %228 = vmatpush1.msra.mxu0 0.0
    %229 = vmatprep.subr.mxu0 0.0
    %230 = vmatpush1.msra.mxu0 0.0
    %231 = vmatprep.subr.mxu0 0.0
    %232 = vmatpush1.msra.mxu0 0.0
    %233 = vmatprep.subr.mxu0 0.0
    %234 = vmatpush1.msra.mxu0 0.0
    %235 = vmatprep.subr.mxu0 0.0
    %236 = vmatpush1.msra.mxu0 0.0
    %237 = vmatprep.subr.mxu0 0.0
    %238 = vmatpush1.msra.mxu0 0.0
    %239 = vmatprep.subr.mxu0 0.0
    %240 = vmatpush1.msra.mxu0 0.0
    %241 = vmatprep.subr.mxu0 0.0
    %242 = vmatpush1.msra.mxu0 0.0
    %243 = vmatprep.mubr.f32.mxu0 0.0
    %244 = vmatmul.mubr.f32.gmra.mrb[0].mxu0 %v174
    %v245 = vpop.f32.mrb[0].mxu0
    %v246 = vadd.f32 %v160, %v245
    %v247 = vpop.f32.mrb[0].mxu0
    %248 = vdwg.mxu0
    %v249 = vlaneseq
    %v250 = vshrl.u32 %v249, 7
    %vm251 = vcmp.eq.s32.totalorder %v250, 0
    %s252 = sld [smem:[#allocation2]]
    %v253 = vstv %s252
    %v254 = vsel %vm251, %v253, 0.0
    %vm255 = vcmp.eq.s32.totalorder %v250, 1
    %s256 = sld [smem:[#allocation2 + $0x1]]
    %v257 = vstv %s256
    %v258 = vsel %vm255, %v257, %v254
    %v259 = vld [vmem:[%s3 + $0x8] sm:$0x1]
    %v260 = vlaneseq
    %v261 = vshrl.u32 %v260, 7
    %v262 = vsub.s32 0, %v261
    %v263 = vrot.slane %v259, %v262
    %v264 = vmul.f32 %v258, %v263
    %v265 = vadd.f32 %v246, %v264
    %v266 = vld [vmem:[%s3 + $0x9] sm:$0x1]
    %v267 = vlaneseq
    %v268 = vshrl.u32 %v267, 7
    %v269 = vsub.s32 0, %v268
    %v270 = vrot.slane %v266, %v269
    %v271 = vadd.f32 %v265, %v270
    %v272 = vmax.f32 %v271, 0.0
    %v273 = vld [vmem:[%s4] sm:$0xff]
    %v274 = vld [vmem:[%s4 + $0x8] sm:$0xff]
    %v275 = vld [vmem:[%s4 + $0x10] sm:$0xff]
    %v276 = vld [vmem:[%s4 + $0x18] sm:$0xff]
    %v277 = vld [vmem:[%s4 + $0x20] sm:$0x1]
    %v278 = vlaneseq
    %v279 = vshrl.u32 %v278, 7
    %v280 = vsub.s32 0, %v279
    %v281 = vrot.slane %v277, %v280
    %vm282 = vcmask 261120
    %v284 = vsel %vm282, %v272, 0
    %286 = vmatprep.subr.mxu0 0.0
    %287 = vmatpush1.msra.mxu0 %v273
    %288 = vmatprep.subr.mxu0 0.0
    %289 = vmatpush1.msra.mxu0 %v274
    %290 = vmatprep.subr.mxu0 0.0
    %291 = vmatpush1.msra.mxu0 %v275
    %292 = vmatprep.subr.mxu0 0.0
    %293 = vmatpush1.msra.mxu0 %v276
    %294 = vmatprep.subr.mxu0 0.0
    %295 = vmatpush1.msra.mxu0 0.0
    %296 = vmatprep.subr.mxu0 0.0
    %297 = vmatpush1.msra.mxu0 0.0
    %298 = vmatprep.subr.mxu0 0.0
    %299 = vmatpush1.msra.mxu0 0.0
    %300 = vmatprep.subr.mxu0 0.0
    %301 = vmatpush1.msra.mxu0 0.0
    %302 = vmatprep.subr.mxu0 0.0
    %303 = vmatpush1.msra.mxu0 0.0
    %304 = vmatprep.subr.mxu0 0.0
    %305 = vmatpush1.msra.mxu0 0.0
    %306 = vmatprep.subr.mxu0 0.0
    %307 = vmatpush1.msra.mxu0 0.0
    %308 = vmatprep.subr.mxu0 0.0
    %309 = vmatpush1.msra.mxu0 0.0
    %310 = vmatprep.subr.mxu0 0.0
    %311 = vmatpush1.msra.mxu0 0.0
    %312 = vmatprep.subr.mxu0 0.0
    %313 = vmatpush1.msra.mxu0 0.0
    %314 = vmatprep.subr.mxu0 0.0
    %315 = vmatpush1.msra.mxu0 0.0
    %316 = vmatprep.subr.mxu0 0.0
    %317 = vmatpush1.msra.mxu0 0.0
    %318 = vmatprep.subr.mxu0 0.0
    %319 = vmatpush1.msra.mxu0 0.0
    %320 = vmatprep.subr.mxu0 0.0
    %321 = vmatpush1.msra.mxu0 0.0
    %322 = vmatprep.subr.mxu0 0.0
    %323 = vmatpush1.msra.mxu0 0.0
    %324 = vmatprep.subr.mxu0 0.0
    %325 = vmatpush1.msra.mxu0 0.0
    %326 = vmatprep.subr.mxu0 0.0
    %327 = vmatpush1.msra.mxu0 0.0
    %328 = vmatprep.subr.mxu0 0.0
    %329 = vmatpush1.msra.mxu0 0.0
    %330 = vmatprep.subr.mxu0 0.0
    %331 = vmatpush1.msra.mxu0 0.0
    %332 = vmatprep.subr.mxu0 0.0
    %333 = vmatpush1.msra.mxu0 0.0
    %334 = vmatprep.subr.mxu0 0.0
    %335 = vmatpush1.msra.mxu0 0.0
    %336 = vmatprep.subr.mxu0 0.0
    %337 = vmatpush1.msra.mxu0 0.0
    %338 = vmatprep.subr.mxu0 0.0
    %339 = vmatpush1.msra.mxu0 0.0
    %340 = vmatprep.subr.mxu0 0.0
    %341 = vmatpush1.msra.mxu0 0.0
    %342 = vmatprep.subr.mxu0 0.0
    %343 = vmatpush1.msra.mxu0 0.0
    %344 = vmatprep.subr.mxu0 0.0
    %345 = vmatpush1.msra.mxu0 0.0
    %346 = vmatprep.subr.mxu0 0.0
    %347 = vmatpush1.msra.mxu0 0.0
    %348 = vmatprep.subr.mxu0 0.0
    %349 = vmatpush1.msra.mxu0 0.0
    %350 = vmatprep.mubr.f32.mxu0 0.0
    %351 = vmatmul.mubr.f32.gmra.mrb[0].mxu0 %v284
    %v352 = vpop.f32.mrb[0].mxu0
    %v353 = vadd.f32 %v281, %v352
    %v354 = vpop.f32.mrb[0].mxu0
    %355 = vdwg.mxu0
    %vm356 = vcmask 58368
    %v357 = vsel %vm356, %v353, -inf
    %358 = vmax.xlane.f32.xlu0 %v357
    %v359 = vpop.xlane.xlu0 %358
    %v360 = vsub.f32 %v353, %v359
    %v361 = vmul.f32 %v360, 1.442695
    %v362 = vpow.pop %v361
    %v363 = vsel %vm356, %v362, 0.0
    %364 = vadd.xlane.f32.xlu0 %v363
    %v365 = vpop.xlane.xlu0 %364
    %v366 = vrcp.pop %v365
    %v367 = vmul.f32 %v362, %v366
    %368 = vst.msk [vmem:[#allocation5] sm:$0x3] %vm356, %v367
    // Predicated region
    $region26: #{simple_classifier_2_forward.1} parent=1 // pred_check
      _
    $region27: #{simple_classifier_2_forward.1} parent=1 // pred_check_branch
      %370 = sbr.rel (0) target = $region29
    $region28: #{simple_classifier_2_forward.1} parent=1 // pred_region
      %s372 = ssub.s32 32, 32
      %373 = vsyncadd [#allocation3], %s372
      %s375 = sshll.u32 [#allocation5], 4
      %s376 = int_to_ptr.vmem [resolvable:$true] %s375
      %378 = dma.vmem_to_hbm [thread:$0]  %s376, 32, %s5, [#allocation3]
    $region29: #{simple_classifier_2_forward.1} parent=1 // pred_fallthru
      _
    // Predicated region
    $region30: #{simple_classifier_2_forward.1} parent=1 // pred_check
      _
    $region31: #{simple_classifier_2_forward.1} parent=1 // pred_check_branch
      %380 = sbr.rel (0) target = $region33
    $region32: #{simple_classifier_2_forward.1} parent=1 // pred_region
      %381 = dma.done [#allocation3], 32
    $region33: #{simple_classifier_2_forward.1} parent=1 // pred_fallthru
      _
    %382 = vsyncpa [#allocation3], 1
    %383 = vsyncpa [#allocation4], 1

</llo_original>
